<compile_context>
chip_gen: v6e
topology: v6e:2x2x1
jax: 0.10.0
libtpu: 0.0.40
codegen_flags: <defaults>
</compile_context>

<pallas_src>
import jax
import jax.numpy as jnp
from jax.experimental import pallas as pl
from jax.experimental.pallas import tpu as pltpu


def _discriminator_kernel(x_ref, w1_ref, b1_ref, w2_ref, b2_ref, o_ref):
    # x_ref : (TB, size)   bf16      w1_ref: (size, hidden) bf16
    # b1_ref: (1, hidden)  f32       w2_ref: (1, hidden)    f32
    # b2_ref: (1, 1)       f32 SMEM  o_ref : (TB, 1)        f32
    # fc1 on the MXU: bf16 inputs, f32 accumulation.
    h = jnp.dot(x_ref[...], w1_ref[...], preferred_element_type=jnp.float32)
    h = h + b1_ref[...]                                   # f32 bias add (VPU)
    # fc2 (out_features == 1): VPU multiply + lane reduction instead of an
    # N=1 MXU pass that would waste the systolic array.
    logits = jnp.sum(h * w2_ref[...], axis=-1, keepdims=True) + b2_ref[0, 0]
    o_ref[...] = jax.nn.sigmoid(logits).astype(o_ref.dtype)   # f32 sigmoid (EUP)


def discriminator_forward(x_flat, w1, b1, w2, b2, *, tb=None):
    """x_flat: (B, size) f32; w1: (size, hidden); b1: (1, hidden);
    w2: (hidden, 1); b2: (1, 1).  Returns (B, 1) f32."""
    B, size = x_flat.shape
    hidden = w1.shape[1]

    if tb is None:
        # Batch tile: large enough to amortize per-step overhead, small enough
        # that 2x double-buffered bf16 x tiles + resident bf16 w1 stay far
        # below the v7x scoped-VMEM default.
        tb = B if B <= 512 else 512
    # (8,128) rule: tb must be a multiple of 8 or equal the full batch dim.
    assert tb == B or tb % 8 == 0, "tb must equal B or be a multiple of 8"
    grid = (pl.cdiv(B, tb),)

    # bf16 only on the matmul inputs (bandwidth win); biases / fc2 stay f32.
    x_bf16 = x_flat.astype(jnp.bfloat16)
    w1_bf16 = w1.astype(jnp.bfloat16)
    w2_row = w2.reshape(1, hidden).astype(jnp.float32)
    b2_s = b2.reshape(1, 1).astype(jnp.float32)

    flops = 2 * B * size * hidden + 2 * B * hidden
    bytes_accessed = (
        x_bf16.size * 2 + w1_bf16.size * 2
        + b1.size * 4 + w2_row.size * 4 + b2_s.size * 4 + B * 4
    )

    return pl.pallas_call(
        _discriminator_kernel,
        out_shape=jax.ShapeDtypeStruct((B, 1), jnp.float32),
        grid=grid,
        in_specs=[
            pl.BlockSpec((tb, size), lambda i: (i, 0)),        # x: batch-tiled
            pl.BlockSpec((size, hidden), lambda i: (0, 0)),    # w1: VMEM-resident
            pl.BlockSpec((1, hidden), lambda i: (0, 0)),       # b1
            pl.BlockSpec((1, hidden), lambda i: (0, 0)),       # w2 (as a row)
            pl.BlockSpec(memory_space=pltpu.MemorySpace.SMEM),  # b2 scalar
        ],
        out_specs=pl.BlockSpec((tb, 1), lambda i: (i, 0)),
        compiler_params=pltpu.CompilerParams(
            dimension_semantics=("parallel",)),
        cost_estimate=pl.CostEstimate(
            flops=flops, transcendentals=B, bytes_accessed=bytes_accessed),
    )(x_bf16, w1_bf16, b1, w2_row, b2_s)


class Discriminator:
    """JAX/Pallas port of the PyTorch Discriminator."""

    def __init__(self, dim, key):
        self.dim = dim
        self.size = dim[0] * dim[1]
        hidden = 100

        k1, k2, k3, k4 = jax.random.split(key, 4)
        # Mirrors nn.Linear default init U(-1/sqrt(fan_in), 1/sqrt(fan_in)).
        lim1 = 1.0 / jnp.sqrt(jnp.float32(self.size))
        lim2 = 1.0 / jnp.sqrt(jnp.float32(hidden))
        # Stored as (in, out) so the math is x @ W (== x @ W_torch.T).
        self.w1 = jax.random.uniform(k1, (self.size, hidden), jnp.float32, -lim1, lim1)
        self.b1 = jax.random.uniform(k2, (1, hidden), jnp.float32, -lim1, lim1)
        self.w2 = jax.random.uniform(k3, (hidden, 1), jnp.float32, -lim2, lim2)
        self.b2 = jax.random.uniform(k4, (1, 1), jnp.float32, -lim2, lim2)

    def __call__(self, x, *, tb=None):
        # x: (B, *dim)  ->  flatten like x.view(x.size(0), -1)
        x_flat = x.reshape(x.shape[0], -1).astype(jnp.float32)
        return discriminator_forward(x_flat, self.w1, self.b1, self.w2, self.b2, tb=tb)


def _reference(x_flat, model):
    # Matches kernel numerics: bf16-quantized matmul inputs, f32 accumulation.
    xb = x_flat.astype(jnp.bfloat16).astype(jnp.float32)
    w1b = model.w1.astype(jnp.bfloat16).astype(jnp.float32)
    h = xb @ w1b + model.b1
    return jax.nn.sigmoid(h @ model.w2 + model.b2)


if __name__ == "__main__":
    key = jax.random.PRNGKey(0)
    k_in, k_in2, k_params = jax.random.split(key, 3)

    dim = (16, 16)            # self.size = 256
    model = Discriminator(dim, k_params)

    # --- main check: small batch, single grid step ---
    batch = 2
    x = jax.random.normal(k_in, (batch, dim[0], dim[1]), dtype=jnp.float32)
    out = jax.block_until_ready(model(x))
    assert out.shape == (batch, 1)
    ref = _reference(x.reshape(batch, -1), model)
    assert jnp.allclose(out, ref, atol=1e-4), "mismatch vs reference (batch=2)"

    # --- tiling check: multi-step grid with a partial last batch tile ---
    batch2 = 20
    x2 = jax.random.normal(k_in2, (batch2, dim[0], dim[1]), dtype=jnp.float32)
    out2 = jax.block_until_ready(model(x2, tb=8))   # grid = cdiv(20, 8) = 3
    ref2 = _reference(x2.reshape(batch2, -1), model)
    assert out2.shape == (batch2, 1)
    assert jnp.allclose(out2, ref2, atol=1e-4), "mismatch vs reference (tiled batch)"

    # loose sanity vs full-f32 math (bf16 inputs introduce only small error)
    ref_f32 = jax.nn.sigmoid((x.reshape(batch, -1) @ model.w1 + model.b1)
                             @ model.w2 + model.b2)
    assert jnp.allclose(out, ref_f32, atol=5e-2)

    print("KERNEL_OK")
</pallas_src>

<mosaic_0001>
module attributes {stable_mosaic.version = 11 : i64} {
  func.func @_discriminator_kernel(%arg0: i32, %arg1: memref<2x256xbf16, #tpu.memory_space<vmem>>, %arg2: memref<256x100xbf16, #tpu.memory_space<vmem>>, %arg3: memref<1x100xf32, #tpu.memory_space<vmem>>, %arg4: memref<1x100xf32, #tpu.memory_space<vmem>>, %arg5: memref<1x1xf32, #tpu.memory_space<smem>>, %arg6: memref<2x1xf32, #tpu.memory_space<vmem>>) attributes {dimension_semantics = [#tpu.dimension_semantics<parallel>], iteration_bounds = array<i64: 1>, scalar_prefetch = 0 : i64, scratch_operands = 0 : i64, tpu.core_type = #tpu.core_type<tc>, window_params = [{transform_indices = @transform_0, window_bounds = array<i64: 2, 256>}, {pipeline_mode = #tpu.pipeline_mode<synchronous>, transform_indices = @transform_1, window_bounds = array<i64: 256, 100>}, {pipeline_mode = #tpu.pipeline_mode<synchronous>, transform_indices = @transform_2, window_bounds = array<i64: 1, 100>}, {pipeline_mode = #tpu.pipeline_mode<synchronous>, transform_indices = @transform_3, window_bounds = array<i64: 1, 100>}, {transform_indices = @transform_4, window_bounds = array<i64: 1, 1>}, {transform_indices = @transform_5, window_bounds = array<i64: 2, 1>}]} {
    %c0 = arith.constant 0 : index
    %c0_0 = arith.constant 0 : index
    %0 = vector.load %arg1[%c0, %c0_0] : memref<2x256xbf16, #tpu.memory_space<vmem>>, vector<2x256xbf16>
    %c0_1 = arith.constant 0 : index
    %c0_2 = arith.constant 0 : index
    %1 = vector.load %arg2[%c0_1, %c0_2] : memref<256x100xbf16, #tpu.memory_space<vmem>>, vector<256x100xbf16>
    %cst = arith.constant dense<0.000000e+00> : vector<2x100xf32>
    %2 = tpu.matmul %0, %1, %cst {dimension_numbers = #tpu.dot_dimension_numbers<[1], [0], [0], [1], [0, 0, 1, 1], [], []>} : vector<2x256xbf16>, vector<256x100xbf16>, vector<2x100xf32> -> vector<2x100xf32>
    %c0_3 = arith.constant 0 : index
    %c0_4 = arith.constant 0 : index
    %3 = vector.load %arg3[%c0_3, %c0_4] : memref<1x100xf32, #tpu.memory_space<vmem>>, vector<1x100xf32>
    %4 = vector.broadcast %3 : vector<1x100xf32> to vector<2x100xf32>
    %5 = arith.addf %2, %4 : vector<2x100xf32>
    %c0_5 = arith.constant 0 : index
    %c0_6 = arith.constant 0 : index
    %6 = vector.load %arg4[%c0_5, %c0_6] : memref<1x100xf32, #tpu.memory_space<vmem>>, vector<1x100xf32>
    %7 = vector.broadcast %6 : vector<1x100xf32> to vector<2x100xf32>
    %8 = arith.mulf %5, %7 : vector<2x100xf32>
    %cst_7 = arith.constant dense<0.000000e+00> : vector<2xf32>
    %9 = vector.multi_reduction <add>, %8, %cst_7 [1] : vector<2x100xf32> to vector<2xf32>
    %10 = vector.shape_cast %9 : vector<2xf32> to vector<2x1xf32>
    %c0_8 = arith.constant 0 : index
    %c0_9 = arith.constant 0 : index
    %11 = memref.load %arg5[%c0_8, %c0_9] : memref<1x1xf32, #tpu.memory_space<smem>>
    %12 = vector.broadcast %11 : f32 to vector<2x1xf32>
    %13 = arith.addf %10, %12 : vector<2x1xf32>
    %14 = arith.negf %13 : vector<2x1xf32>
    %15 = math.exp %14 : vector<2x1xf32>
    %cst_10 = arith.constant 1.000000e+00 : f32
    %16 = vector.broadcast %cst_10 : f32 to vector<2x1xf32>
    %17 = arith.addf %16, %15 : vector<2x1xf32>
    %18 = arith.divf %16, %17 : vector<2x1xf32>
    %c0_11 = arith.constant 0 : index
    %c0_12 = arith.constant 0 : index
    %19 = vector.load %arg6[%c0_11, %c0_12] : memref<2x1xf32, #tpu.memory_space<vmem>>, vector<2x1xf32>
    tpu.vector_store %arg6[%c0_11, %c0_12], %18 {strides = array<i32>} : memref<2x1xf32, #tpu.memory_space<vmem>>, vector<2x1xf32>,
    return
  }
  func.func @transform_0(%arg0: i32) -> (i32, i32) {
    %c0_i32 = arith.constant 0 : i32
    %c0_i32_0 = arith.constant 0 : i32
    return %arg0, %c0_i32 : i32, i32
  }
  func.func @transform_1(%arg0: i32) -> (i32, i32) {
    %c0_i32 = arith.constant 0 : i32
    %c0_i32_0 = arith.constant 0 : i32
    %c0_i32_1 = arith.constant 0 : i32
    return %c0_i32, %c0_i32_0 : i32, i32
  }
  func.func @transform_2(%arg0: i32) -> (i32, i32) {
    %c0_i32 = arith.constant 0 : i32
    %c0_i32_0 = arith.constant 0 : i32
    %c0_i32_1 = arith.constant 0 : i32
    return %c0_i32, %c0_i32_0 : i32, i32
  }
  func.func @transform_3(%arg0: i32) -> (i32, i32) {
    %c0_i32 = arith.constant 0 : i32
    %c0_i32_0 = arith.constant 0 : i32
    %c0_i32_1 = arith.constant 0 : i32
    return %c0_i32, %c0_i32_0 : i32, i32
  }
  func.func @transform_4(%arg0: i32) -> (i32, i32) {
    %c0_i32 = arith.constant 0 : i32
    %c0_i32_0 = arith.constant 0 : i32
    %c0_i32_1 = arith.constant 0 : i32
    return %c0_i32, %c0_i32_0 : i32, i32
  }
  func.func @transform_5(%arg0: i32) -> (i32, i32) {
    %c0_i32 = arith.constant 0 : i32
    %c0_i32_0 = arith.constant 0 : i32
    return %arg0, %c0_i32 : i32, i32
  }
}

</mosaic_0001>

<llo_original>
// kernel: tpu_custom_call.1
$region0: #{tpu_custom_call.1}
  #allocation0 [shape = 'u32[]', space=smem, size = 0x4, offset = 0x4, fixed_abs, tag = 'smem constant byte address 0x4 - core index']
  #allocation1 [shape = 'u32[144,128]{1,0:T(1,128)}', space=vmem, size = 0x12000, scoped, tag = 'internal scratch']
  #allocation2 [shape = 'f32[1,1]{1,0:T(1,128)S(6)}', space=smem, size = 0x200, scoped, tag = 'scoped memory for tpu_custom_call.1']
  %s0 = inlined_call_operand.vmem [shape: bf16[2,256], index: 0, kind: input, shape index: {}]
  %s1 = inlined_call_operand.vmem [shape: bf16[256,100], index: 1, kind: input, shape index: {}]
  %s2 = inlined_call_operand.vmem [shape: f32[1,100], index: 2, kind: input, shape index: {}]
  %s3 = inlined_call_operand.vmem [shape: f32[1,100], index: 3, kind: input, shape index: {}]
  %s4 = inlined_call_operand.<no memory space> [shape: f32[1,1], index: 4, kind: input, shape index: {}]
  %s5 = inlined_call_operand.vmem [shape: f32[2,1], index: 5, kind: output, shape index: {}]
  %s6 = sld [smem:[#allocation0]]
  $region30: #{tpu_custom_call.1} parent=0
    _
  %s8 = ssub.s32 1, %s6
  %s9 = scalar_select 0, %s8, %s6
  %10 = sst [smem:[#allocation2]] %s4
  // Predicated region
  $region2: #{tpu_custom_call.1} parent=0 // pred_check
    _
  $region3: #{tpu_custom_call.1} parent=0 // pred_check_branch
    %12 = sbr.rel (0) target = $region5
  $region4: #{tpu_custom_call.1} parent=0 // pred_region
    _
  $region5: #{tpu_custom_call.1} parent=0 // pred_fallthru
    _
  // Predicated region
  $region6: #{tpu_custom_call.1} parent=0 // pred_check
    _
  $region7: #{tpu_custom_call.1} parent=0 // pred_check_branch
    %14 = sbr.rel (0) target = $region9
  $region8: #{tpu_custom_call.1} parent=0 // pred_region
    _
  $region9: #{tpu_custom_call.1} parent=0 // pred_fallthru
    _
  // Predicated region
  $region10: #{tpu_custom_call.1} parent=0 // pred_check
    _
  $region11: #{tpu_custom_call.1} parent=0 // pred_check_branch
    %16 = sbr.rel (0) target = $region13
  $region12: #{tpu_custom_call.1} parent=0 // pred_region
    _
  $region13: #{tpu_custom_call.1} parent=0 // pred_fallthru
    _
  // Predicated region
  $region14: #{tpu_custom_call.1} parent=0 // pred_check
    _
  $region15: #{tpu_custom_call.1} parent=0 // pred_check_branch
    %18 = sbr.rel (0) target = $region17
  $region16: #{tpu_custom_call.1} parent=0 // pred_region
    _
  $region17: #{tpu_custom_call.1} parent=0 // pred_fallthru
    _
  // Predicated region
  $region18: #{tpu_custom_call.1} parent=0 // pred_check
    _
  $region19: #{tpu_custom_call.1} parent=0 // pred_check_branch
    %20 = sbr.rel (0) target = $region21
  $region20: #{tpu_custom_call.1} parent=0 // pred_region
    _
  $region21: #{tpu_custom_call.1} parent=0 // pred_fallthru
    _
  %v22 = vld [vmem:[%s0] sm:$0x3]
  %v23 = vld [vmem:[%s1] sm:$0xf]
  %v24 = vld [vmem:[%s1 + $0x4] sm:$0xf]
  %v25 = vld [vmem:[%s1 + $0x8] sm:$0xf]
  %v26 = vld [vmem:[%s1 + $0xc] sm:$0xf]
  %v27 = vld [vmem:[%s1 + $0x10] sm:$0xf]
  %v28 = vld [vmem:[%s1 + $0x14] sm:$0xf]
  %v29 = vld [vmem:[%s1 + $0x18] sm:$0xf]
  %v30 = vld [vmem:[%s1 + $0x1c] sm:$0xf]
  %v31 = vld [vmem:[%s1 + $0x20] sm:$0xf]
  %v32 = vld [vmem:[%s1 + $0x24] sm:$0xf]
  %v33 = vld [vmem:[%s1 + $0x28] sm:$0xf]
  %v34 = vld [vmem:[%s1 + $0x2c] sm:$0xf]
  %v35 = vld [vmem:[%s1 + $0x30] sm:$0xf]
  %v36 = vld [vmem:[%s1 + $0x34] sm:$0xf]
  %v37 = vld [vmem:[%s1 + $0x38] sm:$0xf]
  %v38 = vld [vmem:[%s1 + $0x3c] sm:$0xf]
  %v39 = vld [vmem:[%s1 + $0x40] sm:$0xf]
  %v40 = vld [vmem:[%s1 + $0x44] sm:$0xf]
  %v41 = vld [vmem:[%s1 + $0x48] sm:$0xf]
  %v42 = vld [vmem:[%s1 + $0x4c] sm:$0xf]
  %v43 = vld [vmem:[%s1 + $0x50] sm:$0xf]
  %v44 = vld [vmem:[%s1 + $0x54] sm:$0xf]
  %v45 = vld [vmem:[%s1 + $0x58] sm:$0xf]
  %v46 = vld [vmem:[%s1 + $0x5c] sm:$0xf]
  %v47 = vld [vmem:[%s1 + $0x60] sm:$0xf]
  %v48 = vld [vmem:[%s1 + $0x64] sm:$0xf]
  %v49 = vld [vmem:[%s1 + $0x68] sm:$0xf]
  %v50 = vld [vmem:[%s1 + $0x6c] sm:$0xf]
  %v51 = vld [vmem:[%s1 + $0x70] sm:$0xf]
  %v52 = vld [vmem:[%s1 + $0x74] sm:$0xf]
  %v53 = vld [vmem:[%s1 + $0x78] sm:$0xf]
  %v54 = vld [vmem:[%s1 + $0x7c] sm:$0xf]
  %v55 = vld [vmem:[%s2] sm:$0x1]
  %v57 = vlaneseq
  %v58 = vshrl.u32 %v57, 7
  %v59 = vsub.s32 0, %v58
  %v60 = vrot.slane %v55, %v59
  %v64 = vunpack.c.l.s4 1966171168
  %v65 = vunpack.c.0.s8 %v64
  %v66 = vlaneseq
  %v67 = vshrl.u32 %v66, 7
  %v68 = vsub.s32 %v65, %v67
  %v69 = vrot.slane %v22, %v68
  %v70 = vcombine.high %v69, %v69
  %v72 = vunpack.c.l.s4 1966171168
  %v73 = vunpack.c.0.s8 %v72
  %v74 = vlaneseq
  %v75 = vshrl.u32 %v74, 7
  %v76 = vsub.s32 %v73, %v75
  %v77 = vrot.slane %v69, %v76
  %v79 = vunpack.c.l.s4 1966171168
  %v80 = vunpack.c.0.s8 %v79
  %v81 = vlaneseq
  %v82 = vshrl.u32 %v81, 7
  %v83 = vsub.s32 %v80, %v82
  %v84 = vrot.slane %v70, %v83
  %v119 = vunpack.c.l.b16 %v23
  %v120 = vunpack.c.l.b16 %v24
  %v121 = vunpack.c.l.b16 %v25
  %v122 = vunpack.c.l.b16 %v26
  %v123 = vunpack.c.l.b16 %v27
  %v124 = vunpack.c.l.b16 %v28
  %v125 = vunpack.c.l.b16 %v29
  %v126 = vunpack.c.l.b16 %v30
  %v127 = vunpack.c.l.b16 %v31
  %v128 = vunpack.c.l.b16 %v32
  %v129 = vunpack.c.l.b16 %v33
  %v130 = vunpack.c.l.b16 %v34
  %v131 = vunpack.c.l.b16 %v35
  %v132 = vunpack.c.l.b16 %v36
  %v133 = vunpack.c.l.b16 %v37
  %v134 = vunpack.c.l.b16 %v38
  %v135 = vunpack.c.l.b16 %v39
  %v136 = vunpack.c.l.b16 %v40
  %v137 = vunpack.c.l.b16 %v41
  %v138 = vunpack.c.l.b16 %v42
  %v139 = vunpack.c.l.b16 %v43
  %v140 = vunpack.c.l.b16 %v44
  %v141 = vunpack.c.l.b16 %v45
  %v142 = vunpack.c.l.b16 %v46
  %v143 = vunpack.c.l.b16 %v47
  %v144 = vunpack.c.l.b16 %v48
  %v145 = vunpack.c.l.b16 %v49
  %v146 = vunpack.c.l.b16 %v50
  %v147 = vunpack.c.l.b16 %v51
  %v148 = vunpack.c.l.b16 %v52
  %v149 = vunpack.c.l.b16 %v53
  %v150 = vunpack.c.l.b16 %v54
  %v151 = vpack.c.b16 %v120, %v119
  %v152 = vpack.c.b16 %v122, %v121
  %v153 = vpack.c.b16 %v124, %v123
  %v154 = vpack.c.b16 %v126, %v125
  %v155 = vpack.c.b16 %v128, %v127
  %v156 = vpack.c.b16 %v130, %v129
  %v157 = vpack.c.b16 %v132, %v131
  %v158 = vpack.c.b16 %v134, %v133
  %v159 = vpack.c.b16 %v136, %v135
  %v160 = vpack.c.b16 %v138, %v137
  %v161 = vpack.c.b16 %v140, %v139
  %v162 = vpack.c.b16 %v142, %v141
  %v163 = vpack.c.b16 %v144, %v143
  %v164 = vpack.c.b16 %v146, %v145
  %v165 = vpack.c.b16 %v148, %v147
  %v166 = vpack.c.b16 %v150, %v149
  %183 = vmatprep.subr.bf16.mxu0 0
  %184 = vmatpush1.bf16.msra.mxu0 %v158
  %185 = vmatprep.subr.bf16.mxu0 0
  %186 = vmatpush1.bf16.msra.mxu0 %v157
  %187 = vmatprep.subr.bf16.mxu0 0
  %188 = vmatpush1.bf16.msra.mxu0 %v156
  %189 = vmatprep.subr.bf16.mxu0 0
  %190 = vmatpush1.bf16.msra.mxu0 %v155
  %191 = vmatprep.subr.bf16.mxu0 0
  %192 = vmatpush1.bf16.msra.mxu0 %v154
  %193 = vmatprep.subr.bf16.mxu0 0
  %194 = vmatpush1.bf16.msra.mxu0 %v153
  %195 = vmatprep.subr.bf16.mxu0 0
  %196 = vmatpush1.bf16.msra.mxu0 %v152
  %197 = vmatprep.subr.bf16.mxu0 0
  %198 = vmatpush1.bf16.msra.mxu0 %v151
  %199 = vmatprep.subr.bf16.mxu0 0
  %200 = vmatpush2.bf16.msra.mxu0 %v166
  %201 = vmatprep.subr.bf16.mxu0 0
  %202 = vmatpush2.bf16.msra.mxu0 %v165
  %203 = vmatprep.subr.bf16.mxu0 0
  %204 = vmatpush2.bf16.msra.mxu0 %v164
  %205 = vmatprep.subr.bf16.mxu0 0
  %206 = vmatpush2.bf16.msra.mxu0 %v163
  %207 = vmatprep.subr.bf16.mxu0 0
  %208 = vmatpush2.bf16.msra.mxu0 %v162
  %209 = vmatprep.subr.bf16.mxu0 0
  %210 = vmatpush2.bf16.msra.mxu0 %v161
  %211 = vmatprep.subr.bf16.mxu0 0
  %212 = vmatpush2.bf16.msra.mxu0 %v160
  %213 = vmatprep.subr.bf16.mxu0 0
  %214 = vmatpush2.bf16.msra.mxu0 %v159
  %215 = vmatprep.mubr.bf16.mxu0 %v84
  %216 = vmatmul.mubr.bf16.gmra.mxu0 %v77
  %v217 = vpop.f32.mrf.mxu0
  %v218 = vadd.f32 %v60, %v217
  %v219 = vpop.f32.mrf.mxu0
  %v220 = vpop.f32.mrf.mxu0
  %v221 = vpop.f32.mrf.mxu0
  %222 = vdwg.mxu0
  %v223 = vld [vmem:[%s3] sm:$0x1]
  %v225 = vlaneseq
  %v226 = vshrl.u32 %v225, 7
  %v227 = vsub.s32 0, %v226
  %v228 = vrot.slane %v223, %v227
  %v230 = vmul.f32 %v218, %v228
  %vm231 = vcmask 812032
  %v232 = vsel %vm231, %v230, 0.0
  %233 = vadd.xlane.f32.xlu0 %v232
  %v234 = vpop.xlane.xlu0 %233
  %s235 = sld [smem:[#allocation2]]
  %v236 = vstv %s235
  %v237 = vadd.f32 %v234, %v236
  %v238 = vxor.u32 %v237, 2147483648
  %v239 = vmul.f32 %v238, 1.442695
  %v240 = vpow.pop %v239
  %v241 = vadd.f32 %v240, 1.0
  %v242 = vrcp.pop %v241
  %v243 = vmul.f32 1.0, %v242
  %vm244 = vcmask 1024
  %245 = vst.msk [vmem:[%s5] sm:$0x3] %vm244, %v243
  // Predicated region
  $region22: #{tpu_custom_call.1} parent=0 // pred_check
    _
  $region23: #{tpu_custom_call.1} parent=0 // pred_check_branch
    %247 = sbr.rel (0) target = $region25
  $region24: #{tpu_custom_call.1} parent=0 // pred_region
    _
  $region25: #{tpu_custom_call.1} parent=0 // pred_fallthru
    _
  // Predicated region
  $region26: #{tpu_custom_call.1} parent=0 // pred_check
    _
  $region27: #{tpu_custom_call.1} parent=0 // pred_check_branch
    %249 = sbr.rel (0) target = $region29
  $region28: #{tpu_custom_call.1} parent=0 // pred_region
    _
  $region29: #{tpu_custom_call.1} parent=0 // pred_fallthru
    _

</llo_original>
